<compile_context>
chip_gen: v7x
topology: tpu7x:2x2x1
jax: 0.10.0
libtpu: 0.0.40
codegen_flags: <defaults>
</compile_context>

<pallas_src>
import functools

import jax
import jax.numpy as jnp
from jax.experimental import pallas as pl
from jax.experimental.pallas import tpu as pltpu

LANE = 128
SUBLANE = 16  # native bf16 sublane tile


def _round_up(n, m):
    return ((n + m - 1) // m) * m


def _cdiv(a, b):
    return (a + b - 1) // b


def _pad2(a, rows, cols):
    r, c = a.shape
    return jnp.pad(a, ((0, rows - r), (0, cols - c)))


def _dql_kernel(x_ref,
                w1_ref, b1_ref,
                w2_ref, b2_ref,
                w3_ref, b3_ref,
                w4_ref, b4_ref,
                w5_ref, b5_ref,
                o_ref,
                *, out_dim):
    """Full 5-layer MLP fused in one kernel body (one batch tile per grid step)."""

    def layer(h_bf16, w_ref, b_ref, relu):
        # bf16 x bf16 matmul on the MXU, f32 accumulation.
        acc = jnp.dot(h_bf16, w_ref[...], preferred_element_type=jnp.float32)
        acc = acc + b_ref[...]                  # f32 bias, broadcast over rows
        if relu:
            acc = jnp.maximum(acc, 0.0)         # ReLU in f32 (safe on v5e VPU)
            return acc.astype(jnp.bfloat16)
        return acc                              # final layer stays f32

    h = x_ref[...].astype(jnp.bfloat16)          # (TM, in_dim) f32 -> bf16 in-kernel
    h = layer(h, w1_ref, b1_ref, relu=True)
    h = layer(h, w2_ref, b2_ref, relu=True)
    h = layer(h, w3_ref, b3_ref, relu=True)
    h = layer(h, w4_ref, b4_ref, relu=True)
    acc = layer(h, w5_ref, b5_ref, relu=False)   # (TM, 128) f32; padded cols are 0
    o_ref[...] = acc[:, :out_dim].astype(o_ref.dtype)   # narrow real-width store


def prepare_dql_params(params):
    """One-time preprocessing (do NOT call per forward): pad hidden feature dims
    to 128 lanes with zero rows/cols, cast W to bf16, keep biases f32."""
    in_dim = params[0][0].shape[0]
    out_dim = params[-1][0].shape[1]
    widths = [w.shape[1] for w, _ in params]                 # [256,128,64,32,out]
    # W1 rows stay at the real in_dim (x is unpadded); all layer outputs padded
    # to 128 lanes in VMEM (weights resident), final slice happens in-kernel.
    dims = [in_dim] + [_round_up(n, LANE) for n in widths]

    flat, specs = [], []
    for li, (w, b) in enumerate(params):
        rin, rout = dims[li], dims[li + 1]
        w_p = _pad2(w, rin, rout).astype(jnp.bfloat16)
        b_p = jnp.pad(b, (0, rout - b.shape[0])).reshape(1, rout).astype(jnp.float32)
        flat += [w_p, b_p]
        # Constant index_map -> weights/biases stay resident in VMEM across steps.
        specs.append(pl.BlockSpec((rin, rout), lambda i: (0, 0)))
        specs.append(pl.BlockSpec((1, rout), lambda i: (0, 0)))

    return dict(in_dim=in_dim, out_dim=out_dim, dims=dims,
                flat=tuple(flat), specs=tuple(specs))


def _choose_tiling(B, tm_max):
    """TM multiple of 16 minimizing batch padding; >=2 grid steps when B allows
    so v7x's second TensorCore gets a tile (no-op on single-TC v5e/v6e)."""
    n_steps = _cdiv(B, tm_max)
    tm = _round_up(_cdiv(B, n_steps), SUBLANE)
    if B >= 2 * SUBLANE and _cdiv(B, tm) < 2:
        tm = _round_up(_cdiv(B, 2), SUBLANE)
    b_pad = _round_up(B, tm)
    return tm, b_pad


def dql_forward(x, prepped, *, tm_max=1024):
    """x: (B, input_size) f32; prepped: output of prepare_dql_params().

    Returns (B, output_size) f32, matching the PyTorch module's forward
    (modulo bf16 MXU inputs with f32 accumulation)."""
    B, in_dim = x.shape
    assert in_dim == prepped["in_dim"]
    out_dim = prepped["out_dim"]
    dims = prepped["dims"]

    TM, B_pad = _choose_tiling(B, tm_max)
    x_p = x if B_pad == B else jnp.pad(x, ((0, B_pad - B), (0, 0)))  # f32, batch pad only

    in_specs = [pl.BlockSpec((TM, in_dim), lambda i: (i, 0))] + list(prepped["specs"])
    out_specs = pl.BlockSpec((TM, out_dim), lambda i: (i, 0))
    grid = (B_pad // TM,)

    flops = 2 * B_pad * sum(dims[i] * dims[i + 1] for i in range(len(dims) - 1))
    bytes_accessed = (int(x_p.size) * 4
                      + sum(int(a.size) * a.dtype.itemsize for a in prepped["flat"])
                      + B_pad * out_dim * 4)

    out = pl.pallas_call(
        functools.partial(_dql_kernel, out_dim=out_dim),
        out_shape=jax.ShapeDtypeStruct((B_pad, out_dim), jnp.float32),
        grid_spec=pltpu.PrefetchScalarGridSpec(
            num_scalar_prefetch=0,
            grid=grid,
            in_specs=in_specs,
            out_specs=out_specs,
        ),
        compiler_params=pltpu.CompilerParams(
            dimension_semantics=("parallel",)),   # shards batch tiles across v7x's 2 TCs
        cost_estimate=pl.CostEstimate(
            flops=flops, transcendentals=0, bytes_accessed=bytes_accessed),
    )(x_p, *prepped["flat"])

    return out if B_pad == B else out[:B]


def init_dql_params(key, input_size, output_size):
    """Deterministic PyTorch-style init: U(-1/sqrt(fan_in), 1/sqrt(fan_in))."""
    sizes = [input_size, 256, 128, 64, 32, output_size]
    params = []
    for i in range(len(sizes) - 1):
        fan_in, fan_out = sizes[i], sizes[i + 1]
        key, kw, kb = jax.random.split(key, 3)
        bound = 1.0 / jnp.sqrt(jnp.float32(fan_in))
        w = jax.random.uniform(kw, (fan_in, fan_out), jnp.float32, -bound, bound)
        b = jax.random.uniform(kb, (fan_out,), jnp.float32, -bound, bound)
        params.append((w, b))
    return params


def dql_reference_f32(x, params):
    h = x
    for i, (w, b) in enumerate(params):
        h = h @ w + b
        if i < len(params) - 1:
            h = jnp.maximum(h, 0.0)
    return h


def dql_reference_bf16(x, params):
    """Same numerics as the kernel: bf16 matmul inputs, f32 accumulation."""
    h = x.astype(jnp.bfloat16)
    for i, (w, b) in enumerate(params):
        h = jnp.dot(h, w.astype(jnp.bfloat16),
                    preferred_element_type=jnp.float32) + b
        if i < len(params) - 1:
            h = jnp.maximum(h, 0.0).astype(jnp.bfloat16)
    return h


if __name__ == "__main__":
    key = jax.random.PRNGKey(0)
    B, input_size, output_size = 8, 32, 4

    kx, kp = jax.random.split(key)
    x = jax.random.normal(kx, (B, input_size), jnp.float32)
    params = init_dql_params(kp, input_size, output_size)

    # One-time weight preprocessing (pad to 128 lanes, cast to bf16), cached.
    prepped = prepare_dql_params(params)

    out = dql_forward(x, prepped)
    out = jax.block_until_ready(out)

    assert out.shape == (B, output_size)

    # Tight check against a JAX reference using the identical bf16/f32 path.
    ref_bf16 = dql_reference_bf16(x, params)
    assert jnp.allclose(out, ref_bf16, atol=1e-2, rtol=1e-2), "mismatch vs bf16 reference"

    # Loose check against the pure-f32 PyTorch-equivalent forward
    # (difference is only bf16 MXU input rounding).
    # TODO(synk): run layer matmuls in f32 if exact PyTorch-f32 parity is required.
    ref_f32 = dql_reference_f32(x, params)
    assert jnp.allclose(out, ref_f32, atol=1e-1, rtol=1e-1), "mismatch vs f32 reference"

    print("KERNEL_OK")
</pallas_src>

<mosaic_0001>
module attributes {stable_mosaic.version = 11 : i64} {
  func.func @_dql_kernel(%arg0: i32, %arg1: memref<16x32xf32, #tpu.memory_space<vmem>>, %arg2: memref<32x256xbf16, #tpu.memory_space<vmem>>, %arg3: memref<1x256xf32, #tpu.memory_space<vmem>>, %arg4: memref<256x128xbf16, #tpu.memory_space<vmem>>, %arg5: memref<1x128xf32, #tpu.memory_space<vmem>>, %arg6: memref<128x128xbf16, #tpu.memory_space<vmem>>, %arg7: memref<1x128xf32, #tpu.memory_space<vmem>>, %arg8: memref<128x128xbf16, #tpu.memory_space<vmem>>, %arg9: memref<1x128xf32, #tpu.memory_space<vmem>>, %arg10: memref<128x128xbf16, #tpu.memory_space<vmem>>, %arg11: memref<1x128xf32, #tpu.memory_space<vmem>>, %arg12: memref<16x4xf32, #tpu.memory_space<vmem>>) attributes {dimension_semantics = [#tpu.dimension_semantics<parallel>], iteration_bounds = array<i64: 1>, scalar_prefetch = 0 : i64, scratch_operands = 0 : i64, tpu.core_type = #tpu.core_type<tc>, window_params = [{transform_indices = @transform_0, window_bounds = array<i64: 16, 32>}, {pipeline_mode = #tpu.pipeline_mode<synchronous>, transform_indices = @transform_1, window_bounds = array<i64: 32, 256>}, {pipeline_mode = #tpu.pipeline_mode<synchronous>, transform_indices = @transform_2, window_bounds = array<i64: 1, 256>}, {pipeline_mode = #tpu.pipeline_mode<synchronous>, transform_indices = @transform_3, window_bounds = array<i64: 256, 128>}, {pipeline_mode = #tpu.pipeline_mode<synchronous>, transform_indices = @transform_4, window_bounds = array<i64: 1, 128>}, {pipeline_mode = #tpu.pipeline_mode<synchronous>, transform_indices = @transform_5, window_bounds = array<i64: 128, 128>}, {pipeline_mode = #tpu.pipeline_mode<synchronous>, transform_indices = @transform_6, window_bounds = array<i64: 1, 128>}, {pipeline_mode = #tpu.pipeline_mode<synchronous>, transform_indices = @transform_7, window_bounds = array<i64: 128, 128>}, {pipeline_mode = #tpu.pipeline_mode<synchronous>, transform_indices = @transform_8, window_bounds = array<i64: 1, 128>}, {pipeline_mode = #tpu.pipeline_mode<synchronous>, transform_indices = @transform_9, window_bounds = array<i64: 128, 128>}, {pipeline_mode = #tpu.pipeline_mode<synchronous>, transform_indices = @transform_10, window_bounds = array<i64: 1, 128>}, {transform_indices = @transform_11, window_bounds = array<i64: 16, 4>}]} {
    %c0 = arith.constant 0 : index
    %c0_0 = arith.constant 0 : index
    %0 = vector.load %arg1[%c0, %c0_0] : memref<16x32xf32, #tpu.memory_space<vmem>>, vector<16x32xf32>
    %1 = arith.truncf %0 : vector<16x32xf32> to vector<16x32xbf16>
    %c0_1 = arith.constant 0 : index
    %c0_2 = arith.constant 0 : index
    %2 = vector.load %arg2[%c0_1, %c0_2] : memref<32x256xbf16, #tpu.memory_space<vmem>>, vector<32x256xbf16>
    %cst = arith.constant dense<0.000000e+00> : vector<16x256xf32>
    %3 = tpu.matmul %1, %2, %cst {dimension_numbers = #tpu.dot_dimension_numbers<[1], [0], [0], [1], [0, 0, 1, 1], [], []>} : vector<16x32xbf16>, vector<32x256xbf16>, vector<16x256xf32> -> vector<16x256xf32>
    %c0_3 = arith.constant 0 : index
    %c0_4 = arith.constant 0 : index
    %4 = vector.load %arg3[%c0_3, %c0_4] : memref<1x256xf32, #tpu.memory_space<vmem>>, vector<1x256xf32>
    %5 = vector.broadcast %4 : vector<1x256xf32> to vector<16x256xf32>
    %6 = arith.addf %3, %5 : vector<16x256xf32>
    %cst_5 = arith.constant 0.000000e+00 : f32
    %7 = vector.broadcast %cst_5 : f32 to vector<16x256xf32>
    %8 = arith.maximumf %6, %7 : vector<16x256xf32>
    %9 = arith.truncf %8 : vector<16x256xf32> to vector<16x256xbf16>
    %c0_6 = arith.constant 0 : index
    %c0_7 = arith.constant 0 : index
    %10 = vector.load %arg4[%c0_6, %c0_7] : memref<256x128xbf16, #tpu.memory_space<vmem>>, vector<256x128xbf16>
    %cst_8 = arith.constant dense<0.000000e+00> : vector<16x128xf32>
    %11 = tpu.matmul %9, %10, %cst_8 {dimension_numbers = #tpu.dot_dimension_numbers<[1], [0], [0], [1], [0, 0, 1, 1], [], []>} : vector<16x256xbf16>, vector<256x128xbf16>, vector<16x128xf32> -> vector<16x128xf32>
    %c0_9 = arith.constant 0 : index
    %c0_10 = arith.constant 0 : index
    %12 = vector.load %arg5[%c0_9, %c0_10] : memref<1x128xf32, #tpu.memory_space<vmem>>, vector<1x128xf32>
    %13 = vector.broadcast %12 : vector<1x128xf32> to vector<16x128xf32>
    %14 = arith.addf %11, %13 : vector<16x128xf32>
    %cst_11 = arith.constant 0.000000e+00 : f32
    %15 = vector.broadcast %cst_11 : f32 to vector<16x128xf32>
    %16 = arith.maximumf %14, %15 : vector<16x128xf32>
    %17 = arith.truncf %16 : vector<16x128xf32> to vector<16x128xbf16>
    %c0_12 = arith.constant 0 : index
    %c0_13 = arith.constant 0 : index
    %18 = vector.load %arg6[%c0_12, %c0_13] : memref<128x128xbf16, #tpu.memory_space<vmem>>, vector<128x128xbf16>
    %cst_14 = arith.constant dense<0.000000e+00> : vector<16x128xf32>
    %19 = tpu.matmul %17, %18, %cst_14 {dimension_numbers = #tpu.dot_dimension_numbers<[1], [0], [0], [1], [0, 0, 1, 1], [], []>} : vector<16x128xbf16>, vector<128x128xbf16>, vector<16x128xf32> -> vector<16x128xf32>
    %c0_15 = arith.constant 0 : index
    %c0_16 = arith.constant 0 : index
    %20 = vector.load %arg7[%c0_15, %c0_16] : memref<1x128xf32, #tpu.memory_space<vmem>>, vector<1x128xf32>
    %21 = vector.broadcast %20 : vector<1x128xf32> to vector<16x128xf32>
    %22 = arith.addf %19, %21 : vector<16x128xf32>
    %cst_17 = arith.constant 0.000000e+00 : f32
    %23 = vector.broadcast %cst_17 : f32 to vector<16x128xf32>
    %24 = arith.maximumf %22, %23 : vector<16x128xf32>
    %25 = arith.truncf %24 : vector<16x128xf32> to vector<16x128xbf16>
    %c0_18 = arith.constant 0 : index
    %c0_19 = arith.constant 0 : index
    %26 = vector.load %arg8[%c0_18, %c0_19] : memref<128x128xbf16, #tpu.memory_space<vmem>>, vector<128x128xbf16>
    %cst_20 = arith.constant dense<0.000000e+00> : vector<16x128xf32>
    %27 = tpu.matmul %25, %26, %cst_20 {dimension_numbers = #tpu.dot_dimension_numbers<[1], [0], [0], [1], [0, 0, 1, 1], [], []>} : vector<16x128xbf16>, vector<128x128xbf16>, vector<16x128xf32> -> vector<16x128xf32>
    %c0_21 = arith.constant 0 : index
    %c0_22 = arith.constant 0 : index
    %28 = vector.load %arg9[%c0_21, %c0_22] : memref<1x128xf32, #tpu.memory_space<vmem>>, vector<1x128xf32>
    %29 = vector.broadcast %28 : vector<1x128xf32> to vector<16x128xf32>
    %30 = arith.addf %27, %29 : vector<16x128xf32>
    %cst_23 = arith.constant 0.000000e+00 : f32
    %31 = vector.broadcast %cst_23 : f32 to vector<16x128xf32>
    %32 = arith.maximumf %30, %31 : vector<16x128xf32>
    %33 = arith.truncf %32 : vector<16x128xf32> to vector<16x128xbf16>
    %c0_24 = arith.constant 0 : index
    %c0_25 = arith.constant 0 : index
    %34 = vector.load %arg10[%c0_24, %c0_25] : memref<128x128xbf16, #tpu.memory_space<vmem>>, vector<128x128xbf16>
    %cst_26 = arith.constant dense<0.000000e+00> : vector<16x128xf32>
    %35 = tpu.matmul %33, %34, %cst_26 {dimension_numbers = #tpu.dot_dimension_numbers<[1], [0], [0], [1], [0, 0, 1, 1], [], []>} : vector<16x128xbf16>, vector<128x128xbf16>, vector<16x128xf32> -> vector<16x128xf32>
    %c0_27 = arith.constant 0 : index
    %c0_28 = arith.constant 0 : index
    %36 = vector.load %arg11[%c0_27, %c0_28] : memref<1x128xf32, #tpu.memory_space<vmem>>, vector<1x128xf32>
    %37 = vector.broadcast %36 : vector<1x128xf32> to vector<16x128xf32>
    %38 = arith.addf %35, %37 : vector<16x128xf32>
    %39 = vector.extract_strided_slice %38 {offsets = [0, 0], sizes = [16, 4], strides = [1, 1]} : vector<16x128xf32> to vector<16x4xf32>
    %c0_29 = arith.constant 0 : index
    %c0_30 = arith.constant 0 : index
    %40 = vector.load %arg12[%c0_29, %c0_30] : memref<16x4xf32, #tpu.memory_space<vmem>>, vector<16x4xf32>
    tpu.vector_store %arg12[%c0_29, %c0_30], %39 {strides = array<i32>} : memref<16x4xf32, #tpu.memory_space<vmem>>, vector<16x4xf32>,
    return
  }
  func.func @transform_0(%arg0: i32) -> (i32, i32) {
    %c0_i32 = arith.constant 0 : i32
    %c0_i32_0 = arith.constant 0 : i32
    return %arg0, %c0_i32 : i32, i32
  }
  func.func @transform_1(%arg0: i32) -> (i32, i32) {
    %c0_i32 = arith.constant 0 : i32
    %c0_i32_0 = arith.constant 0 : i32
    %c0_i32_1 = arith.constant 0 : i32
    return %c0_i32, %c0_i32_0 : i32, i32
  }
  func.func @transform_2(%arg0: i32) -> (i32, i32) {
    %c0_i32 = arith.constant 0 : i32
    %c0_i32_0 = arith.constant 0 : i32
    %c0_i32_1 = arith.constant 0 : i32
    return %c0_i32, %c0_i32_0 : i32, i32
  }
  func.func @transform_3(%arg0: i32) -> (i32, i32) {
    %c0_i32 = arith.constant 0 : i32
    %c0_i32_0 = arith.constant 0 : i32
    %c0_i32_1 = arith.constant 0 : i32
    return %c0_i32, %c0_i32_0 : i32, i32
  }
  func.func @transform_4(%arg0: i32) -> (i32, i32) {
    %c0_i32 = arith.constant 0 : i32
    %c0_i32_0 = arith.constant 0 : i32
    %c0_i32_1 = arith.constant 0 : i32
    return %c0_i32, %c0_i32_0 : i32, i32
  }
  func.func @transform_5(%arg0: i32) -> (i32, i32) {
    %c0_i32 = arith.constant 0 : i32
    %c0_i32_0 = arith.constant 0 : i32
    %c0_i32_1 = arith.constant 0 : i32
    return %c0_i32, %c0_i32_0 : i32, i32
  }
  func.func @transform_6(%arg0: i32) -> (i32, i32) {
    %c0_i32 = arith.constant 0 : i32
    %c0_i32_0 = arith.constant 0 : i32
    %c0_i32_1 = arith.constant 0 : i32
    return %c0_i32, %c0_i32_0 : i32, i32
  }
  func.func @transform_7(%arg0: i32) -> (i32, i32) {
    %c0_i32 = arith.constant 0 : i32
    %c0_i32_0 = arith.constant 0 : i32
    %c0_i32_1 = arith.constant 0 : i32
    return %c0_i32, %c0_i32_0 : i32, i32
  }
  func.func @transform_8(%arg0: i32) -> (i32, i32) {
    %c0_i32 = arith.constant 0 : i32
    %c0_i32_0 = arith.constant 0 : i32
    %c0_i32_1 = arith.constant 0 : i32
    return %c0_i32, %c0_i32_0 : i32, i32
  }
  func.func @transform_9(%arg0: i32) -> (i32, i32) {
    %c0_i32 = arith.constant 0 : i32
    %c0_i32_0 = arith.constant 0 : i32
    %c0_i32_1 = arith.constant 0 : i32
    return %c0_i32, %c0_i32_0 : i32, i32
  }
  func.func @transform_10(%arg0: i32) -> (i32, i32) {
    %c0_i32 = arith.constant 0 : i32
    %c0_i32_0 = arith.constant 0 : i32
    %c0_i32_1 = arith.constant 0 : i32
    return %c0_i32, %c0_i32_0 : i32, i32
  }
  func.func @transform_11(%arg0: i32) -> (i32, i32) {
    %c0_i32 = arith.constant 0 : i32
    %c0_i32_0 = arith.constant 0 : i32
    return %arg0, %c0_i32 : i32, i32
  }
}

</mosaic_0001>

<llo_original>
// kernel: tpu_custom_call.1
$region0: #{tpu_custom_call.1}
  #allocation0 [shape = 'u32[]', space=smem, size = 0x4, offset = 0x4, fixed_abs, tag = 'smem constant byte address 0x4 - core index']
  #allocation1 [shape = 'u32[144,128]{1,0:T(1,128)}', space=vmem, size = 0x12000, scoped, tag = 'internal scratch']
  %s0 = inlined_call_operand.hbm [shape: f32[16,32], index: 0, kind: input, shape index: {}]
  %s1 = inlined_call_operand.hbm [shape: bf16[32,256], index: 1, kind: input, shape index: {}]
  %s2 = inlined_call_operand.vmem [shape: f32[1,256], index: 2, kind: input, shape index: {}]
  %s3 = inlined_call_operand.hbm [shape: bf16[256,128], index: 3, kind: input, shape index: {}]
  %s4 = inlined_call_operand.vmem [shape: f32[1,128], index: 4, kind: input, shape index: {}]
  %s5 = inlined_call_operand.hbm [shape: bf16[128,128], index: 5, kind: input, shape index: {}]
  %s6 = inlined_call_operand.vmem [shape: f32[1,128], index: 6, kind: input, shape index: {}]
  %s7 = inlined_call_operand.hbm [shape: bf16[128,128], index: 7, kind: input, shape index: {}]
  %s8 = inlined_call_operand.vmem [shape: f32[1,128], index: 8, kind: input, shape index: {}]
  %s9 = inlined_call_operand.hbm [shape: bf16[128,128], index: 9, kind: input, shape index: {}]
  %s10 = inlined_call_operand.vmem [shape: f32[1,128], index: 10, kind: input, shape index: {}]
  %s11 = inlined_call_operand.vmem [shape: f32[16,4], index: 11, kind: output, shape index: {}]
  %s12 = sld [smem:[#allocation0]]
  $region78: #{tpu_custom_call.1} parent=0
    _
  %s14 = ssub.s32 1, %s12
  %s15 = scalar_select 0, %s14, %s12
  $region1: #{tpu_custom_call.1} parent=0
    #allocation2 [shape = 'u8[8192]{0}', space=vmem, size = 0x2000, scoped, tag = 'input window, operand 0, single buffered']
    #allocation3 [shape = 's32[1]{0}', space=sflag, size = 0x4, scoped, tag = 'scoped memory for tpu_custom_call.1']
    #allocation4 [shape = 'u8[16384]{0}', space=vmem, size = 0x4000, scoped, tag = 'input window, operand 1, single buffered']
    #allocation5 [shape = 's32[1]{0}', space=sflag, size = 0x4, scoped, tag = 'scoped memory for tpu_custom_call.1']
    #allocation6 [shape = 'u8[65536]{0}', space=vmem, size = 0x10000, scoped, tag = 'input window, operand 3, single buffered']
    #allocation7 [shape = 'u8[32768]{0}', space=vmem, size = 0x8000, scoped, tag = 'input window, operand 5, single buffered']
    #allocation8 [shape = 's32[1]{0}', space=sflag, size = 0x4, scoped, tag = 'scoped memory for tpu_custom_call.1']
    #allocation9 [shape = 'u8[32768]{0}', space=vmem, size = 0x8000, scoped, tag = 'input window, operand 7, single buffered']
    #allocation10 [shape = 'u8[32768]{0}', space=vmem, size = 0x8000, scoped, tag = 'input window, operand 9, single buffered']
    #allocation11 [shape = 's32[1]{0}', space=sflag, size = 0x4, scoped, tag = 'scoped memory for tpu_custom_call.1']
    %16 = vsyncpa [#allocation3], 0
    %17 = vsyncpa [#allocation5], 0
    %18 = vsyncpa [#allocation8], 0
    %19 = vsyncpa [#allocation11], 0
    // Predicated region
    $region2: #{tpu_custom_call.1} parent=1 // pred_check
      _
    $region3: #{tpu_custom_call.1} parent=1 // pred_check_branch
      %21 = sbr.rel (0) target = $region5
    $region4: #{tpu_custom_call.1} parent=1 // pred_region
      %s23 = ssub.s32 256, 256
      %24 = vsyncadd [#allocation3], %s23
      %s25 = sshll.u32 [#allocation2], 4
      %s26 = int_to_ptr.vmem [resolvable:$true] %s25
      %31 = dma.hbm_to_vmem [thread:$0]  %s0, 256, %s26, [#allocation3], 128, 128, 8
    $region5: #{tpu_custom_call.1} parent=1 // pred_fallthru
      _
    // Predicated region
    $region6: #{tpu_custom_call.1} parent=1 // pred_check
      _
    $region7: #{tpu_custom_call.1} parent=1 // pred_check_branch
      %33 = sbr.rel (0) target = $region9
    $region8: #{tpu_custom_call.1} parent=1 // pred_region
      %s35 = ssub.s32 512, 512
      %36 = vsyncadd [#allocation5], %s35
      %s37 = sshll.u32 [#allocation4], 4
      %s38 = int_to_ptr.vmem [resolvable:$true] %s37
      %43 = dma.hbm_to_vmem [thread:$0]  %s1, 512, %s38, [#allocation5], 128, 128, 8
    $region9: #{tpu_custom_call.1} parent=1 // pred_fallthru
      _
    // Predicated region
    $region10: #{tpu_custom_call.1} parent=1 // pred_check
      _
    $region11: #{tpu_custom_call.1} parent=1 // pred_check_branch
      %45 = sbr.rel (0) target = $region13
    $region12: #{tpu_custom_call.1} parent=1 // pred_region
      _
    $region13: #{tpu_custom_call.1} parent=1 // pred_fallthru
      _
    // Predicated region
    $region14: #{tpu_custom_call.1} parent=1 // pred_check
      _
    $region15: #{tpu_custom_call.1} parent=1 // pred_check_branch
      %47 = sbr.rel (0) target = $region17
    $region16: #{tpu_custom_call.1} parent=1 // pred_region
      %s49 = ssub.s32 2048, 2048
      %50 = vsyncadd [#allocation5], %s49
      %s51 = sshll.u32 [#allocation6], 4
      %s52 = int_to_ptr.vmem [resolvable:$true] %s51
      %57 = dma.hbm_to_vmem [thread:$0]  %s3, 2048, %s52, [#allocation5], 64, 64, 4
    $region17: #{tpu_custom_call.1} parent=1 // pred_fallthru
      _
    // Predicated region
    $region18: #{tpu_custom_call.1} parent=1 // pred_check
      _
    $region19: #{tpu_custom_call.1} parent=1 // pred_check_branch
      %59 = sbr.rel (0) target = $region21
    $region20: #{tpu_custom_call.1} parent=1 // pred_region
      _
    $region21: #{tpu_custom_call.1} parent=1 // pred_fallthru
      _
    // Predicated region
    $region22: #{tpu_custom_call.1} parent=1 // pred_check
      _
    $region23: #{tpu_custom_call.1} parent=1 // pred_check_branch
      %61 = sbr.rel (0) target = $region25
    $region24: #{tpu_custom_call.1} parent=1 // pred_region
      %s63 = ssub.s32 1024, 1024
      %64 = vsyncadd [#allocation8], %s63
      %s65 = sshll.u32 [#allocation7], 4
      %s66 = int_to_ptr.vmem [resolvable:$true] %s65
      %71 = dma.hbm_to_vmem [thread:$0]  %s5, 1024, %s66, [#allocation8], 64, 64, 4
    $region25: #{tpu_custom_call.1} parent=1 // pred_fallthru
      _
    // Predicated region
    $region26: #{tpu_custom_call.1} parent=1 // pred_check
      _
    $region27: #{tpu_custom_call.1} parent=1 // pred_check_branch
      %73 = sbr.rel (0) target = $region29
    $region28: #{tpu_custom_call.1} parent=1 // pred_region
      _
    $region29: #{tpu_custom_call.1} parent=1 // pred_fallthru
      _
    // Predicated region
    $region30: #{tpu_custom_call.1} parent=1 // pred_check
      _
    $region31: #{tpu_custom_call.1} parent=1 // pred_check_branch
      %75 = sbr.rel (0) target = $region33
    $region32: #{tpu_custom_call.1} parent=1 // pred_region
      %s77 = ssub.s32 1024, 1024
      %78 = vsyncadd [#allocation8], %s77
      %s79 = sshll.u32 [#allocation9], 4
      %s80 = int_to_ptr.vmem [resolvable:$true] %s79
      %85 = dma.hbm_to_vmem [thread:$0]  %s7, 1024, %s80, [#allocation8], 64, 64, 4
    $region33: #{tpu_custom_call.1} parent=1 // pred_fallthru
      _
    // Predicated region
    $region34: #{tpu_custom_call.1} parent=1 // pred_check
      _
    $region35: #{tpu_custom_call.1} parent=1 // pred_check_branch
      %87 = sbr.rel (0) target = $region37
    $region36: #{tpu_custom_call.1} parent=1 // pred_region
      _
    $region37: #{tpu_custom_call.1} parent=1 // pred_fallthru
      _
    // Predicated region
    $region38: #{tpu_custom_call.1} parent=1 // pred_check
      _
    $region39: #{tpu_custom_call.1} parent=1 // pred_check_branch
      %89 = sbr.rel (0) target = $region41
    $region40: #{tpu_custom_call.1} parent=1 // pred_region
      %s91 = ssub.s32 1024, 1024
      %92 = vsyncadd [#allocation11], %s91
      %s93 = sshll.u32 [#allocation10], 4
      %s94 = int_to_ptr.vmem [resolvable:$true] %s93
      %99 = dma.hbm_to_vmem [thread:$0]  %s9, 1024, %s94, [#allocation11], 64, 64, 4
    $region41: #{tpu_custom_call.1} parent=1 // pred_fallthru
      _
    // Predicated region
    $region42: #{tpu_custom_call.1} parent=1 // pred_check
      _
    $region43: #{tpu_custom_call.1} parent=1 // pred_check_branch
      %101 = sbr.rel (0) target = $region45
    $region44: #{tpu_custom_call.1} parent=1 // pred_region
      _
    $region45: #{tpu_custom_call.1} parent=1 // pred_fallthru
      _
    // Predicated region
    $region46: #{tpu_custom_call.1} parent=1 // pred_check
      _
    $region47: #{tpu_custom_call.1} parent=1 // pred_check_branch
      %103 = sbr.rel (0) target = $region49
    $region48: #{tpu_custom_call.1} parent=1 // pred_region
      %104 = dma.done [#allocation3], 256
    $region49: #{tpu_custom_call.1} parent=1 // pred_fallthru
      _
    // Predicated region
    $region50: #{tpu_custom_call.1} parent=1 // pred_check
      _
    $region51: #{tpu_custom_call.1} parent=1 // pred_check_branch
      %106 = sbr.rel (0) target = $region53
    $region52: #{tpu_custom_call.1} parent=1 // pred_region
      %107 = dma.done [#allocation5], 512
    $region53: #{tpu_custom_call.1} parent=1 // pred_fallthru
      _
    // Predicated region
    $region54: #{tpu_custom_call.1} parent=1 // pred_check
      _
    $region55: #{tpu_custom_call.1} parent=1 // pred_check_branch
      %109 = sbr.rel (0) target = $region57
    $region56: #{tpu_custom_call.1} parent=1 // pred_region
      %110 = dma.done [#allocation5], 2048
    $region57: #{tpu_custom_call.1} parent=1 // pred_fallthru
      _
    // Predicated region
    $region58: #{tpu_custom_call.1} parent=1 // pred_check
      _
    $region59: #{tpu_custom_call.1} parent=1 // pred_check_branch
      %112 = sbr.rel (0) target = $region61
    $region60: #{tpu_custom_call.1} parent=1 // pred_region
      %113 = dma.done [#allocation8], 1024
    $region61: #{tpu_custom_call.1} parent=1 // pred_fallthru
      _
    // Predicated region
    $region62: #{tpu_custom_call.1} parent=1 // pred_check
      _
    $region63: #{tpu_custom_call.1} parent=1 // pred_check_branch
      %115 = sbr.rel (0) target = $region65
    $region64: #{tpu_custom_call.1} parent=1 // pred_region
      %116 = dma.done [#allocation8], 1024
    $region65: #{tpu_custom_call.1} parent=1 // pred_fallthru
      _
    // Predicated region
    $region66: #{tpu_custom_call.1} parent=1 // pred_check
      _
    $region67: #{tpu_custom_call.1} parent=1 // pred_check_branch
      %118 = sbr.rel (0) target = $region69
    $region68: #{tpu_custom_call.1} parent=1 // pred_region
      %119 = dma.done [#allocation11], 1024
    $region69: #{tpu_custom_call.1} parent=1 // pred_fallthru
      _
    %v121 = vld [vmem:[#allocation2] sm:$0xff]
    %v122 = vld [vmem:[#allocation2 + $0x8] sm:$0xff]
    %v123 = vpack.c.bf16 %v122, %v121
    %v124 = vld [vmem:[#allocation4] sm:$0xff]
    %v125 = vld [vmem:[#allocation4 + $0x8] sm:$0xff]
    %v126 = vld [vmem:[#allocation4 + $0x10] sm:$0xff]
    %v127 = vld [vmem:[#allocation4 + $0x18] sm:$0xff]
    %v128 = vld [vmem:[%s2] sm:$0x3]
    %v130 = vlaneseq
    %v131 = vshrl.u32 %v130, 7
    %v132 = vsub.s32 0, %v131
    %v133 = vrot.slane %v128, %v132
    %v134 = vlaneseq
    %v135 = vshrl.u32 %v134, 7
    %v136 = vsub.s32 1, %v135
    %v137 = vrot.slane %v128, %v136
    %v144 = vunpack.c.l.b16 %v124
    %v145 = vunpack.c.h.b16 %v124
    %v146 = vunpack.c.l.b16 %v125
    %v147 = vunpack.c.h.b16 %v125
    %v148 = vunpack.c.l.b16 %v126
    %v149 = vunpack.c.h.b16 %v126
    %v150 = vunpack.c.l.b16 %v127
    %v151 = vunpack.c.h.b16 %v127
    %v152 = vpack.c.b16 %v146, %v144
    %v153 = vpack.c.b16 %v147, %v145
    %v154 = vpack.c.b16 %v150, %v148
    %v155 = vpack.c.b16 %v151, %v149
    %vm160 = vcmask 261120
    %v162 = vsel %vm160, %v123, 0
    %164 = vmatprep.subr.bf16.mxu0 %v153
    %165 = vmatpush1.bf16.msra.mxu0 %v152
    %166 = vmatprep.subr.bf16.mxu0 %v155
    %167 = vmatpush1.bf16.msra.mxu0 %v154
    %168 = vmatprep.subr.bf16.mxu0 0
    %169 = vmatpush1.bf16.msra.mxu0 0
    %170 = vmatprep.subr.bf16.mxu0 0
    %171 = vmatpush1.bf16.msra.mxu0 0
    %172 = vmatprep.subr.bf16.mxu0 0
    %173 = vmatpush1.bf16.msra.mxu0 0
    %174 = vmatprep.subr.bf16.mxu0 0
    %175 = vmatpush1.bf16.msra.mxu0 0
    %176 = vmatprep.subr.bf16.mxu0 0
    %177 = vmatpush1.bf16.msra.mxu0 0
    %178 = vmatprep.subr.bf16.mxu0 0
    %179 = vmatpush1.bf16.msra.mxu0 0
    %180 = vmatprep.subr.bf16.mxu0 0
    %181 = vmatpush1.bf16.msra.mxu0 0
    %182 = vmatprep.subr.bf16.mxu0 0
    %183 = vmatpush1.bf16.msra.mxu0 0
    %184 = vmatprep.subr.bf16.mxu0 0
    %185 = vmatpush1.bf16.msra.mxu0 0
    %186 = vmatprep.subr.bf16.mxu0 0
    %187 = vmatpush1.bf16.msra.mxu0 0
    %188 = vmatprep.subr.bf16.mxu0 0
    %189 = vmatpush1.bf16.msra.mxu0 0
    %190 = vmatprep.subr.bf16.mxu0 0
    %191 = vmatpush1.bf16.msra.mxu0 0
    %192 = vmatprep.subr.bf16.mxu0 0
    %193 = vmatpush1.bf16.msra.mxu0 0
    %194 = vmatprep.subr.bf16.mxu0 0
    %195 = vmatpush1.bf16.msra.mxu0 0
    %196 = vmatprep.mubr.bf16.mxu0 0
    %197 = vmatmul.mubr.bf16.gmra.mrb[0].mxu0 %v162
    %v198 = vpop.f32.mrb[0].mxu0
    %v199 = vadd.f32 %v133, %v198
    %v200 = vpop.f32.mrb[0].mxu0
    %v201 = vadd.f32 %v137, %v200
    %v202 = vpop.f32.mrb[0].mxu0
    %v203 = vadd.f32 %v133, %v202
    %v204 = vpop.f32.mrb[0].mxu0
    %v205 = vadd.f32 %v137, %v204
    %206 = vdwg.mxu0
    %v207 = vmax.f32 %v199, 0.0
    %v208 = vmax.f32 %v201, 0.0
    %v209 = vmax.f32 %v203, 0.0
    %v210 = vmax.f32 %v205, 0.0
    %v211 = vpack.c.bf16 %v209, %v207
    %v212 = vpack.c.bf16 %v210, %v208
    %v213 = vld [vmem:[#allocation6] sm:$0xf]
    %v214 = vld [vmem:[#allocation6 + $0x4] sm:$0xf]
    %v215 = vld [vmem:[#allocation6 + $0x8] sm:$0xf]
    %v216 = vld [vmem:[#allocation6 + $0xc] sm:$0xf]
    %v217 = vld [vmem:[#allocation6 + $0x10] sm:$0xf]
    %v218 = vld [vmem:[#allocation6 + $0x14] sm:$0xf]
    %v219 = vld [vmem:[#allocation6 + $0x18] sm:$0xf]
    %v220 = vld [vmem:[#allocation6 + $0x1c] sm:$0xf]
    %v221 = vld [vmem:[#allocation6 + $0x20] sm:$0xf]
    %v222 = vld [vmem:[#allocation6 + $0x24] sm:$0xf]
    %v223 = vld [vmem:[#allocation6 + $0x28] sm:$0xf]
    %v224 = vld [vmem:[#allocation6 + $0x2c] sm:$0xf]
    %v225 = vld [vmem:[#allocation6 + $0x30] sm:$0xf]
    %v226 = vld [vmem:[#allocation6 + $0x34] sm:$0xf]
    %v227 = vld [vmem:[#allocation6 + $0x38] sm:$0xf]
    %v228 = vld [vmem:[#allocation6 + $0x3c] sm:$0xf]
    %v229 = vld [vmem:[#allocation6 + $0x40] sm:$0xf]
    %v230 = vld [vmem:[#allocation6 + $0x44] sm:$0xf]
    %v231 = vld [vmem:[#allocation6 + $0x48] sm:$0xf]
    %v232 = vld [vmem:[#allocation6 + $0x4c] sm:$0xf]
    %v233 = vld [vmem:[#allocation6 + $0x50] sm:$0xf]
    %v234 = vld [vmem:[#allocation6 + $0x54] sm:$0xf]
    %v235 = vld [vmem:[#allocation6 + $0x58] sm:$0xf]
    %v236 = vld [vmem:[#allocation6 + $0x5c] sm:$0xf]
    %v237 = vld [vmem:[#allocation6 + $0x60] sm:$0xf]
    %v238 = vld [vmem:[#allocation6 + $0x64] sm:$0xf]
    %v239 = vld [vmem:[#allocation6 + $0x68] sm:$0xf]
    %v240 = vld [vmem:[#allocation6 + $0x6c] sm:$0xf]
    %v241 = vld [vmem:[#allocation6 + $0x70] sm:$0xf]
    %v242 = vld [vmem:[#allocation6 + $0x74] sm:$0xf]
    %v243 = vld [vmem:[#allocation6 + $0x78] sm:$0xf]
    %v244 = vld [vmem:[#allocation6 + $0x7c] sm:$0xf]
    %v245 = vld [vmem:[%s4] sm:$0x1]
    %v247 = vlaneseq
    %v248 = vshrl.u32 %v247, 7
    %v249 = vsub.s32 0, %v248
    %v250 = vrot.slane %v245, %v249
    %v284 = vunpack.c.l.b16 %v213
    %v285 = vunpack.c.l.b16 %v214
    %v286 = vunpack.c.l.b16 %v215
    %v287 = vunpack.c.l.b16 %v216
    %v288 = vunpack.c.l.b16 %v217
    %v289 = vunpack.c.l.b16 %v218
    %v290 = vunpack.c.l.b16 %v219
    %v291 = vunpack.c.l.b16 %v220
    %v292 = vunpack.c.l.b16 %v221
    %v293 = vunpack.c.l.b16 %v222
    %v294 = vunpack.c.l.b16 %v223
    %v295 = vunpack.c.l.b16 %v224
    %v296 = vunpack.c.l.b16 %v225
    %v297 = vunpack.c.l.b16 %v226
    %v298 = vunpack.c.l.b16 %v227
    %v299 = vunpack.c.l.b16 %v228
    %v300 = vunpack.c.l.b16 %v229
    %v301 = vunpack.c.l.b16 %v230
    %v302 = vunpack.c.l.b16 %v231
    %v303 = vunpack.c.l.b16 %v232
    %v304 = vunpack.c.l.b16 %v233
    %v305 = vunpack.c.l.b16 %v234
    %v306 = vunpack.c.l.b16 %v235
    %v307 = vunpack.c.l.b16 %v236
    %v308 = vunpack.c.l.b16 %v237
    %v309 = vunpack.c.l.b16 %v238
    %v310 = vunpack.c.l.b16 %v239
    %v311 = vunpack.c.l.b16 %v240
    %v312 = vunpack.c.l.b16 %v241
    %v313 = vunpack.c.l.b16 %v242
    %v314 = vunpack.c.l.b16 %v243
    %v315 = vunpack.c.l.b16 %v244
    %v316 = vpack.c.b16 %v285, %v284
    %v317 = vpack.c.b16 %v287, %v286
    %v318 = vpack.c.b16 %v289, %v288
    %v319 = vpack.c.b16 %v291, %v290
    %v320 = vpack.c.b16 %v293, %v292
    %v321 = vpack.c.b16 %v295, %v294
    %v322 = vpack.c.b16 %v297, %v296
    %v323 = vpack.c.b16 %v299, %v298
    %v324 = vpack.c.b16 %v301, %v300
    %v325 = vpack.c.b16 %v303, %v302
    %v326 = vpack.c.b16 %v305, %v304
    %v327 = vpack.c.b16 %v307, %v306
    %v328 = vpack.c.b16 %v309, %v308
    %v329 = vpack.c.b16 %v311, %v310
    %v330 = vpack.c.b16 %v313, %v312
    %v331 = vpack.c.b16 %v315, %v314
    %348 = vmatprep.subr.bf16.mxu0 0
    %349 = vmatpush1.bf16.msra.mxu0 %v316
    %350 = vmatprep.subr.bf16.mxu0 0
    %351 = vmatpush1.bf16.msra.mxu0 %v317
    %352 = vmatprep.subr.bf16.mxu0 0
    %353 = vmatpush1.bf16.msra.mxu0 %v318
    %354 = vmatprep.subr.bf16.mxu0 0
    %355 = vmatpush1.bf16.msra.mxu0 %v319
    %356 = vmatprep.subr.bf16.mxu0 0
    %357 = vmatpush1.bf16.msra.mxu0 %v320
    %358 = vmatprep.subr.bf16.mxu0 0
    %359 = vmatpush1.bf16.msra.mxu0 %v321
    %360 = vmatprep.subr.bf16.mxu0 0
    %361 = vmatpush1.bf16.msra.mxu0 %v322
    %362 = vmatprep.subr.bf16.mxu0 0
    %363 = vmatpush1.bf16.msra.mxu0 %v323
    %364 = vmatprep.subr.bf16.mxu0 0
    %365 = vmatpush1.bf16.msra.mxu0 %v324
    %366 = vmatprep.subr.bf16.mxu0 0
    %367 = vmatpush1.bf16.msra.mxu0 %v325
    %368 = vmatprep.subr.bf16.mxu0 0
    %369 = vmatpush1.bf16.msra.mxu0 %v326
    %370 = vmatprep.subr.bf16.mxu0 0
    %371 = vmatpush1.bf16.msra.mxu0 %v327
    %372 = vmatprep.subr.bf16.mxu0 0
    %373 = vmatpush1.bf16.msra.mxu0 %v328
    %374 = vmatprep.subr.bf16.mxu0 0
    %375 = vmatpush1.bf16.msra.mxu0 %v329
    %376 = vmatprep.subr.bf16.mxu0 0
    %377 = vmatpush1.bf16.msra.mxu0 %v330
    %378 = vmatprep.subr.bf16.mxu0 0
    %379 = vmatpush1.bf16.msra.mxu0 %v331
    %380 = vmatprep.mubr.bf16.mxu0 %v212
    %381 = vmatmul.mubr.bf16.gmra.mrb[0].mxu0 %v211
    %v382 = vpop.f32.mrb[0].mxu0
    %v383 = vadd.f32 %v250, %v382
    %v384 = vpop.f32.mrb[0].mxu0
    %v385 = vpop.f32.mrb[0].mxu0
    %v386 = vadd.f32 %v250, %v385
    %v387 = vpop.f32.mrb[0].mxu0
    %388 = vdwg.mxu0
    %v389 = vmax.f32 %v383, 0.0
    %v390 = vmax.f32 %v386, 0.0
    %v391 = vpack.c.bf16 %v390, %v389
    %v392 = vld [vmem:[#allocation7] sm:$0xf]
    %v393 = vld [vmem:[#allocation7 + $0x4] sm:$0xf]
    %v394 = vld [vmem:[#allocation7 + $0x8] sm:$0xf]
    %v395 = vld [vmem:[#allocation7 + $0xc] sm:$0xf]
    %v396 = vld [vmem:[#allocation7 + $0x10] sm:$0xf]
    %v397 = vld [vmem:[#allocation7 + $0x14] sm:$0xf]
    %v398 = vld [vmem:[#allocation7 + $0x18] sm:$0xf]
    %v399 = vld [vmem:[#allocation7 + $0x1c] sm:$0xf]
    %v400 = vld [vmem:[#allocation7 + $0x20] sm:$0xf]
    %v401 = vld [vmem:[#allocation7 + $0x24] sm:$0xf]
    %v402 = vld [vmem:[#allocation7 + $0x28] sm:$0xf]
    %v403 = vld [vmem:[#allocation7 + $0x2c] sm:$0xf]
    %v404 = vld [vmem:[#allocation7 + $0x30] sm:$0xf]
    %v405 = vld [vmem:[#allocation7 + $0x34] sm:$0xf]
    %v406 = vld [vmem:[#allocation7 + $0x38] sm:$0xf]
    %v407 = vld [vmem:[#allocation7 + $0x3c] sm:$0xf]
    %v408 = vld [vmem:[%s6] sm:$0x1]
    %v410 = vlaneseq
    %v411 = vshrl.u32 %v410, 7
    %v412 = vsub.s32 0, %v411
    %v413 = vrot.slane %v408, %v412
    %v431 = vunpack.c.l.b16 %v392
    %v432 = vunpack.c.l.b16 %v393
    %v433 = vunpack.c.l.b16 %v394
    %v434 = vunpack.c.l.b16 %v395
    %v435 = vunpack.c.l.b16 %v396
    %v436 = vunpack.c.l.b16 %v397
    %v437 = vunpack.c.l.b16 %v398
    %v438 = vunpack.c.l.b16 %v399
    %v439 = vunpack.c.l.b16 %v400
    %v440 = vunpack.c.l.b16 %v401
    %v441 = vunpack.c.l.b16 %v402
    %v442 = vunpack.c.l.b16 %v403
    %v443 = vunpack.c.l.b16 %v404
    %v444 = vunpack.c.l.b16 %v405
    %v445 = vunpack.c.l.b16 %v406
    %v446 = vunpack.c.l.b16 %v407
    %v447 = vpack.c.b16 %v432, %v431
    %v448 = vpack.c.b16 %v434, %v433
    %v449 = vpack.c.b16 %v436, %v435
    %v450 = vpack.c.b16 %v438, %v437
    %v451 = vpack.c.b16 %v440, %v439
    %v452 = vpack.c.b16 %v442, %v441
    %v453 = vpack.c.b16 %v444, %v443
    %v454 = vpack.c.b16 %v446, %v445
    %463 = vmatprep.subr.bf16.mxu0 0
    %464 = vmatpush1.bf16.msra.mxu0 %v447
    %465 = vmatprep.subr.bf16.mxu0 0
    %466 = vmatpush1.bf16.msra.mxu0 %v448
    %467 = vmatprep.subr.bf16.mxu0 0
    %468 = vmatpush1.bf16.msra.mxu0 %v449
    %469 = vmatprep.subr.bf16.mxu0 0
    %470 = vmatpush1.bf16.msra.mxu0 %v450
    %471 = vmatprep.subr.bf16.mxu0 0
    %472 = vmatpush1.bf16.msra.mxu0 %v451
    %473 = vmatprep.subr.bf16.mxu0 0
    %474 = vmatpush1.bf16.msra.mxu0 %v452
    %475 = vmatprep.subr.bf16.mxu0 0
    %476 = vmatpush1.bf16.msra.mxu0 %v453
    %477 = vmatprep.subr.bf16.mxu0 0
    %478 = vmatpush1.bf16.msra.mxu0 %v454
    %479 = vmatprep.subr.bf16.mxu0 0
    %480 = vmatpush1.bf16.msra.mxu0 0
    %481 = vmatprep.subr.bf16.mxu0 0
    %482 = vmatpush1.bf16.msra.mxu0 0
    %483 = vmatprep.subr.bf16.mxu0 0
    %484 = vmatpush1.bf16.msra.mxu0 0
    %485 = vmatprep.subr.bf16.mxu0 0
    %486 = vmatpush1.bf16.msra.mxu0 0
    %487 = vmatprep.subr.bf16.mxu0 0
    %488 = vmatpush1.bf16.msra.mxu0 0
    %489 = vmatprep.subr.bf16.mxu0 0
    %490 = vmatpush1.bf16.msra.mxu0 0
    %491 = vmatprep.subr.bf16.mxu0 0
    %492 = vmatpush1.bf16.msra.mxu0 0
    %493 = vmatprep.subr.bf16.mxu0 0
    %494 = vmatpush1.bf16.msra.mxu0 0
    %495 = vmatprep.mubr.bf16.mxu0 0
    %496 = vmatmul.mubr.bf16.gmra.mrb[0].mxu0 %v391
    %v497 = vpop.f32.mrb[0].mxu0
    %v498 = vadd.f32 %v413, %v497
    %v499 = vpop.f32.mrb[0].mxu0
    %v500 = vpop.f32.mrb[0].mxu0
    %v501 = vadd.f32 %v413, %v500
    %v502 = vpop.f32.mrb[0].mxu0
    %503 = vdwg.mxu0
    %v504 = vmax.f32 %v498, 0.0
    %v505 = vmax.f32 %v501, 0.0
    %v506 = vpack.c.bf16 %v505, %v504
    %v507 = vld [vmem:[#allocation9] sm:$0xf]
    %v508 = vld [vmem:[#allocation9 + $0x4] sm:$0xf]
    %v509 = vld [vmem:[#allocation9 + $0x8] sm:$0xf]
    %v510 = vld [vmem:[#allocation9 + $0xc] sm:$0xf]
    %v511 = vld [vmem:[#allocation9 + $0x10] sm:$0xf]
    %v512 = vld [vmem:[#allocation9 + $0x14] sm:$0xf]
    %v513 = vld [vmem:[#allocation9 + $0x18] sm:$0xf]
    %v514 = vld [vmem:[#allocation9 + $0x1c] sm:$0xf]
    %v515 = vld [vmem:[#allocation9 + $0x20] sm:$0xf]
    %v516 = vld [vmem:[#allocation9 + $0x24] sm:$0xf]
    %v517 = vld [vmem:[#allocation9 + $0x28] sm:$0xf]
    %v518 = vld [vmem:[#allocation9 + $0x2c] sm:$0xf]
    %v519 = vld [vmem:[#allocation9 + $0x30] sm:$0xf]
    %v520 = vld [vmem:[#allocation9 + $0x34] sm:$0xf]
    %v521 = vld [vmem:[#allocation9 + $0x38] sm:$0xf]
    %v522 = vld [vmem:[#allocation9 + $0x3c] sm:$0xf]
    %v523 = vld [vmem:[%s8] sm:$0x1]
    %v525 = vlaneseq
    %v526 = vshrl.u32 %v525, 7
    %v527 = vsub.s32 0, %v526
    %v528 = vrot.slane %v523, %v527
    %v546 = vunpack.c.l.b16 %v507
    %v547 = vunpack.c.l.b16 %v508
    %v548 = vunpack.c.l.b16 %v509
    %v549 = vunpack.c.l.b16 %v510
    %v550 = vunpack.c.l.b16 %v511
    %v551 = vunpack.c.l.b16 %v512
    %v552 = vunpack.c.l.b16 %v513
    %v553 = vunpack.c.l.b16 %v514
    %v554 = vunpack.c.l.b16 %v515
    %v555 = vunpack.c.l.b16 %v516
    %v556 = vunpack.c.l.b16 %v517
    %v557 = vunpack.c.l.b16 %v518
    %v558 = vunpack.c.l.b16 %v519
    %v559 = vunpack.c.l.b16 %v520
    %v560 = vunpack.c.l.b16 %v521
    %v561 = vunpack.c.l.b16 %v522
    %v562 = vpack.c.b16 %v547, %v546
    %v563 = vpack.c.b16 %v549, %v548
    %v564 = vpack.c.b16 %v551, %v550
    %v565 = vpack.c.b16 %v553, %v552
    %v566 = vpack.c.b16 %v555, %v554
    %v567 = vpack.c.b16 %v557, %v556
    %v568 = vpack.c.b16 %v559, %v558
    %v569 = vpack.c.b16 %v561, %v560
    %578 = vmatprep.subr.bf16.mxu0 0
    %579 = vmatpush1.bf16.msra.mxu0 %v562
    %580 = vmatprep.subr.bf16.mxu0 0
    %581 = vmatpush1.bf16.msra.mxu0 %v563
    %582 = vmatprep.subr.bf16.mxu0 0
    %583 = vmatpush1.bf16.msra.mxu0 %v564
    %584 = vmatprep.subr.bf16.mxu0 0
    %585 = vmatpush1.bf16.msra.mxu0 %v565
    %586 = vmatprep.subr.bf16.mxu0 0
    %587 = vmatpush1.bf16.msra.mxu0 %v566
    %588 = vmatprep.subr.bf16.mxu0 0
    %589 = vmatpush1.bf16.msra.mxu0 %v567
    %590 = vmatprep.subr.bf16.mxu0 0
    %591 = vmatpush1.bf16.msra.mxu0 %v568
    %592 = vmatprep.subr.bf16.mxu0 0
    %593 = vmatpush1.bf16.msra.mxu0 %v569
    %594 = vmatprep.subr.bf16.mxu0 0
    %595 = vmatpush1.bf16.msra.mxu0 0
    %596 = vmatprep.subr.bf16.mxu0 0
    %597 = vmatpush1.bf16.msra.mxu0 0
    %598 = vmatprep.subr.bf16.mxu0 0
    %599 = vmatpush1.bf16.msra.mxu0 0
    %600 = vmatprep.subr.bf16.mxu0 0
    %601 = vmatpush1.bf16.msra.mxu0 0
    %602 = vmatprep.subr.bf16.mxu0 0
    %603 = vmatpush1.bf16.msra.mxu0 0
    %604 = vmatprep.subr.bf16.mxu0 0
    %605 = vmatpush1.bf16.msra.mxu0 0
    %606 = vmatprep.subr.bf16.mxu0 0
    %607 = vmatpush1.bf16.msra.mxu0 0
    %608 = vmatprep.subr.bf16.mxu0 0
    %609 = vmatpush1.bf16.msra.mxu0 0
    %610 = vmatprep.mubr.bf16.mxu0 0
    %611 = vmatmul.mubr.bf16.gmra.mrb[0].mxu0 %v506
    %v612 = vpop.f32.mrb[0].mxu0
    %v613 = vadd.f32 %v528, %v612
    %v614 = vpop.f32.mrb[0].mxu0
    %v615 = vpop.f32.mrb[0].mxu0
    %v616 = vadd.f32 %v528, %v615
    %v617 = vpop.f32.mrb[0].mxu0
    %618 = vdwg.mxu0
    %v619 = vmax.f32 %v613, 0.0
    %v620 = vmax.f32 %v616, 0.0
    %v621 = vpack.c.bf16 %v620, %v619
    %v622 = vld [vmem:[#allocation10] sm:$0xf]
    %v623 = vld [vmem:[#allocation10 + $0x4] sm:$0xf]
    %v624 = vld [vmem:[#allocation10 + $0x8] sm:$0xf]
    %v625 = vld [vmem:[#allocation10 + $0xc] sm:$0xf]
    %v626 = vld [vmem:[#allocation10 + $0x10] sm:$0xf]
    %v627 = vld [vmem:[#allocation10 + $0x14] sm:$0xf]
    %v628 = vld [vmem:[#allocation10 + $0x18] sm:$0xf]
    %v629 = vld [vmem:[#allocation10 + $0x1c] sm:$0xf]
    %v630 = vld [vmem:[#allocation10 + $0x20] sm:$0xf]
    %v631 = vld [vmem:[#allocation10 + $0x24] sm:$0xf]
    %v632 = vld [vmem:[#allocation10 + $0x28] sm:$0xf]
    %v633 = vld [vmem:[#allocation10 + $0x2c] sm:$0xf]
    %v634 = vld [vmem:[#allocation10 + $0x30] sm:$0xf]
    %v635 = vld [vmem:[#allocation10 + $0x34] sm:$0xf]
    %v636 = vld [vmem:[#allocation10 + $0x38] sm:$0xf]
    %v637 = vld [vmem:[#allocation10 + $0x3c] sm:$0xf]
    %v638 = vld [vmem:[%s10] sm:$0x1]
    %v640 = vlaneseq
    %v641 = vshrl.u32 %v640, 7
    %v642 = vsub.s32 0, %v641
    %v643 = vrot.slane %v638, %v642
    %v661 = vunpack.c.l.b16 %v622
    %v662 = vunpack.c.l.b16 %v623
    %v663 = vunpack.c.l.b16 %v624
    %v664 = vunpack.c.l.b16 %v625
    %v665 = vunpack.c.l.b16 %v626
    %v666 = vunpack.c.l.b16 %v627
    %v667 = vunpack.c.l.b16 %v628
    %v668 = vunpack.c.l.b16 %v629
    %v669 = vunpack.c.l.b16 %v630
    %v670 = vunpack.c.l.b16 %v631
    %v671 = vunpack.c.l.b16 %v632
    %v672 = vunpack.c.l.b16 %v633
    %v673 = vunpack.c.l.b16 %v634
    %v674 = vunpack.c.l.b16 %v635
    %v675 = vunpack.c.l.b16 %v636
    %v676 = vunpack.c.l.b16 %v637
    %v677 = vpack.c.b16 %v662, %v661
    %v678 = vpack.c.b16 %v664, %v663
    %v679 = vpack.c.b16 %v666, %v665
    %v680 = vpack.c.b16 %v668, %v667
    %v681 = vpack.c.b16 %v670, %v669
    %v682 = vpack.c.b16 %v672, %v671
    %v683 = vpack.c.b16 %v674, %v673
    %v684 = vpack.c.b16 %v676, %v675
    %693 = vmatprep.subr.bf16.mxu0 0
    %694 = vmatpush1.bf16.msra.mxu0 %v677
    %695 = vmatprep.subr.bf16.mxu0 0
    %696 = vmatpush1.bf16.msra.mxu0 %v678
    %697 = vmatprep.subr.bf16.mxu0 0
    %698 = vmatpush1.bf16.msra.mxu0 %v679
    %699 = vmatprep.subr.bf16.mxu0 0
    %700 = vmatpush1.bf16.msra.mxu0 %v680
    %701 = vmatprep.subr.bf16.mxu0 0
    %702 = vmatpush1.bf16.msra.mxu0 %v681
    %703 = vmatprep.subr.bf16.mxu0 0
    %704 = vmatpush1.bf16.msra.mxu0 %v682
    %705 = vmatprep.subr.bf16.mxu0 0
    %706 = vmatpush1.bf16.msra.mxu0 %v683
    %707 = vmatprep.subr.bf16.mxu0 0
    %708 = vmatpush1.bf16.msra.mxu0 %v684
    %709 = vmatprep.subr.bf16.mxu0 0
    %710 = vmatpush1.bf16.msra.mxu0 0
    %711 = vmatprep.subr.bf16.mxu0 0
    %712 = vmatpush1.bf16.msra.mxu0 0
    %713 = vmatprep.subr.bf16.mxu0 0
    %714 = vmatpush1.bf16.msra.mxu0 0
    %715 = vmatprep.subr.bf16.mxu0 0
    %716 = vmatpush1.bf16.msra.mxu0 0
    %717 = vmatprep.subr.bf16.mxu0 0
    %718 = vmatpush1.bf16.msra.mxu0 0
    %719 = vmatprep.subr.bf16.mxu0 0
    %720 = vmatpush1.bf16.msra.mxu0 0
    %721 = vmatprep.subr.bf16.mxu0 0
    %722 = vmatpush1.bf16.msra.mxu0 0
    %723 = vmatprep.subr.bf16.mxu0 0
    %724 = vmatpush1.bf16.msra.mxu0 0
    %725 = vmatprep.mubr.bf16.mxu0 0
    %726 = vmatmul.mubr.bf16.gmra.mrb[0].mxu0 %v621
    %v727 = vpop.f32.mrb[0].mxu0
    %v728 = vadd.f32 %v643, %v727
    %v729 = vpop.f32.mrb[0].mxu0
    %v730 = vpop.f32.mrb[0].mxu0
    %v731 = vadd.f32 %v643, %v730
    %v732 = vpop.f32.mrb[0].mxu0
    %733 = vdwg.mxu0
    %vm734 = vcmask 31744
    %735 = vst.msk [vmem:[%s11] sm:$0xff] %vm734, %v728
    %736 = vst.msk [vmem:[%s11 + $0x8] sm:$0xff] %vm734, %v731
    // Predicated region
    $region70: #{tpu_custom_call.1} parent=1 // pred_check
      _
    $region71: #{tpu_custom_call.1} parent=1 // pred_check_branch
      %738 = sbr.rel (0) target = $region73
    $region72: #{tpu_custom_call.1} parent=1 // pred_region
      _
    $region73: #{tpu_custom_call.1} parent=1 // pred_fallthru
      _
    // Predicated region
    $region74: #{tpu_custom_call.1} parent=1 // pred_check
      _
    $region75: #{tpu_custom_call.1} parent=1 // pred_check_branch
      %740 = sbr.rel (0) target = $region77
    $region76: #{tpu_custom_call.1} parent=1 // pred_region
      _
    $region77: #{tpu_custom_call.1} parent=1 // pred_fallthru
      _
    %741 = vsyncpa [#allocation3], 1
    %742 = vsyncpa [#allocation5], 1
    %743 = vsyncpa [#allocation8], 1
    %744 = vsyncpa [#allocation11], 1

</llo_original>
